<compile_context>
chip_gen: v5e
topology: v5e:2x2
jax: 0.10.0
libtpu: 0.0.40
codegen_flags: <defaults>
</compile_context>

<pallas_src>
import functools

import jax
import jax.numpy as jnp
from jax import lax
from jax.experimental import pallas as pl
from jax.experimental.pallas import tpu as pltpu


def _fc_kernel_factory(nk, tk_eff, k_rem, need_k_mask, use_scratch, apply_relu):
    """Builds the kernel body with all shape decisions baked in statically."""

    def kernel(x_ref, w_ref, b_ref, o_ref, *scratch):
        # x_ref: (tm, tk), w_ref: (tk, tn), b_ref: (1, tn), o_ref: (tm, tn)
        acc_ref = scratch[0] if use_scratch else o_ref
        k = pl.program_id(2)

        # Fold the bias into the accumulator init -> epilogue is ReLU-only.
        @pl.when(k == 0)
        def _():
            acc_ref[...] = jnp.broadcast_to(
                b_ref[...].astype(acc_ref.dtype), acc_ref.shape
            )

        x_blk = x_ref[...]
        w_blk = w_ref[...]
        if need_k_mask:
            # Only the K (reduction) tail must be masked: garbage there would
            # corrupt real outputs.  M/N overhang only feeds output regions
            # that Pallas discards on store, so it needs no handling.
            limit = jnp.where(k == nk - 1, k_rem, tk_eff)
            col = lax.broadcasted_iota(jnp.int32, x_blk.shape, 1)
            x_blk = jnp.where(col < limit, x_blk, jnp.zeros_like(x_blk))
            row = lax.broadcasted_iota(jnp.int32, w_blk.shape, 0)
            w_blk = jnp.where(row < limit, w_blk, jnp.zeros_like(w_blk))

        acc_ref[...] += jnp.dot(
            x_blk, w_blk, preferred_element_type=jnp.float32
        ).astype(acc_ref.dtype)

        if apply_relu or use_scratch:
            @pl.when(k == nk - 1)
            def _():
                res = acc_ref[...]
                if apply_relu:
                    res = jnp.maximum(res, jnp.zeros_like(res))
                o_ref[...] = res.astype(o_ref.dtype)

    return kernel


@functools.partial(jax.jit, static_argnames=("tm", "tn", "tk", "apply_relu"))
def fully_connected_block(x, weight_t, bias=None, *, tm=512, tn=512, tk=1024,
                          apply_relu=True):
    """activation(x @ weight_t + bias) via a Pallas TPU kernel.

    x:        [batch, dim_in]   (f32 or bf16; bf16 uses the MXU bf16 path)
    weight_t: [dim_in, dim_out] (transpose of nn.Linear's weight)
    bias:     [dim_out] or None
    """
    batch, dim_in = x.shape
    dim_out = weight_t.shape[1]
    out_dtype = x.dtype

    if bias is None:
        bias = jnp.zeros((dim_out,), dtype=out_dtype)
    bias2d = bias.reshape(1, dim_out)

    # Effective tiles: clamp to the full dim when the problem is smaller than
    # the tile (full-dim blocks are always layout-legal regardless of 8/128
    # alignment); otherwise keep the MXU/lane-aligned default and let the M/N
    # edge blocks overhang.  No padding, no output slicing.
    tm_eff = tm if batch > tm else batch
    tn_eff = tn if dim_out > tn else dim_out
    tk_eff = tk if dim_in > tk else dim_in

    grid = (pl.cdiv(batch, tm_eff),
            pl.cdiv(dim_out, tn_eff),
            pl.cdiv(dim_in, tk_eff))
    nk = grid[2]
    k_rem = dim_in - (nk - 1) * tk_eff
    need_k_mask = k_rem != tk_eff  # static

    # f32 output -> accumulate straight into the resident output block,
    # skip the scratch accumulator and its final copy pass.
    use_scratch = out_dtype != jnp.float32
    scratch_shapes = (
        [pltpu.VMEM((tm_eff, tn_eff), jnp.float32)] if use_scratch else []
    )

    # VMEM budget: double-buffered inputs + output + optional accumulator,
    # with headroom; cap at 48 MiB so it is safe on v7x (64 MiB physical).
    in_b = x.dtype.itemsize
    out_b = jnp.dtype(out_dtype).itemsize
    footprint = (2 * (tm_eff * tk_eff + tk_eff * tn_eff) * in_b
                 + 2 * tm_eff * tn_eff * out_b
                 + (tm_eff * tn_eff * 4 if use_scratch else 0))
    vmem_limit = int(min(max(2 * footprint, 32 << 20), 48 << 20))

    kernel = _fc_kernel_factory(
        nk, tk_eff, k_rem, need_k_mask, use_scratch, apply_relu
    )

    return pl.pallas_call(
        kernel,
        out_shape=jax.ShapeDtypeStruct((batch, dim_out), out_dtype),
        grid_spec=pltpu.PrefetchScalarGridSpec(
            num_scalar_prefetch=0,
            grid=grid,
            in_specs=[
                pl.BlockSpec((tm_eff, tk_eff), lambda i, j, k: (i, k)),  # x
                pl.BlockSpec((tk_eff, tn_eff), lambda i, j, k: (k, j)),  # W^T
                pl.BlockSpec((1, tn_eff), lambda i, j, k: (0, j)),       # bias
            ],
            out_specs=pl.BlockSpec((tm_eff, tn_eff), lambda i, j, k: (i, j)),
            scratch_shapes=scratch_shapes,
        ),
        compiler_params=pltpu.CompilerParams(
            dimension_semantics=("parallel", "parallel", "arbitrary"),
            vmem_limit_bytes=vmem_limit,
        ),
    )(x, weight_t, bias2d)


def reference(x, weight_t, bias):
    return jnp.maximum(x @ weight_t + bias[None, :], 0.0)


if __name__ == "__main__":
    key = jax.random.PRNGKey(0)
    k_x, k_w, k_b = jax.random.split(key, 3)

    # Small shapes consistent with FullyConnectedBlock(dim_in, dim_out).
    batch, dim_in, dim_out = 16, 32, 64

    x = jax.random.normal(k_x, (batch, dim_in), dtype=jnp.float32)
    # PyTorch nn.Linear stores weight as [dim_out, dim_in]; pass the transpose.
    w = jax.random.normal(k_w, (dim_out, dim_in), dtype=jnp.float32) * 0.1
    b = jax.random.normal(k_b, (dim_out,), dtype=jnp.float32) * 0.1
    weight_t = w.T  # [dim_in, dim_out]

    out = jax.block_until_ready(fully_connected_block(x, weight_t, b))
    ref = reference(x, weight_t, b)
    assert out.shape == (batch, dim_out)
    assert jnp.allclose(out, ref, atol=1e-5, rtol=1e-5), "f32 mismatch"

    # Non-tile-divisible batch: exercises the M-overhang path (no padding,
    # no output slicing in the wrapper).
    x2 = jax.random.normal(k_x, (13, dim_in), dtype=jnp.float32)
    out2 = jax.block_until_ready(fully_connected_block(x2, weight_t, b))
    assert jnp.allclose(out2, reference(x2, weight_t, b), atol=1e-5, rtol=1e-5), \
        "overhang-M mismatch"

    # K-tiled path with a masked reduction tail (dim_in > tk, non-divisible).
    dim_in3 = 160
    x3 = jax.random.normal(k_x, (24, dim_in3), dtype=jnp.float32)
    w3 = jax.random.normal(k_w, (dim_out, dim_in3), dtype=jnp.float32) * 0.1
    out3 = jax.block_until_ready(fully_connected_block(x3, w3.T, b, tk=128))
    assert jnp.allclose(out3, reference(x3, w3.T, b), atol=1e-4, rtol=1e-4), \
        "masked-K mismatch"

    # bf16 inputs (MXU bf16 path, f32 accumulation inside the kernel).
    xb = x.astype(jnp.bfloat16)
    wb = weight_t.astype(jnp.bfloat16)
    bb = b.astype(jnp.bfloat16)
    outb = jax.block_until_ready(fully_connected_block(xb, wb, bb))
    assert outb.dtype == jnp.bfloat16
    assert jnp.allclose(outb.astype(jnp.float32), ref, atol=0.05, rtol=0.05), \
        "bf16 mismatch"

    print("KERNEL_OK")
</pallas_src>

<mosaic_0001>
module attributes {stable_mosaic.version = 11 : i64} {
  func.func @kernel(%arg0: i32, %arg1: i32, %arg2: i32, %arg3: memref<16x32xf32, #tpu.memory_space<vmem>>, %arg4: memref<32x64xf32, #tpu.memory_space<vmem>>, %arg5: memref<1x64xf32, #tpu.memory_space<vmem>>, %arg6: memref<16x64xf32, #tpu.memory_space<vmem>>) attributes {dimension_semantics = [#tpu.dimension_semantics<parallel>, #tpu.dimension_semantics<parallel>, #tpu.dimension_semantics<arbitrary>], iteration_bounds = array<i64: 1, 1, 1>, scalar_prefetch = 0 : i64, scratch_operands = 0 : i64, tpu.core_type = #tpu.core_type<tc>, window_params = [{transform_indices = @transform_0, window_bounds = array<i64: 16, 32>}, {transform_indices = @transform_1, window_bounds = array<i64: 32, 64>}, {transform_indices = @transform_2, window_bounds = array<i64: 1, 64>}, {transform_indices = @transform_3, window_bounds = array<i64: 16, 64>}]} {
    %c0_i32 = arith.constant 0 : i32
    %0 = arith.cmpi eq, %arg2, %c0_i32 : i32
    %1 = arith.extui %0 : i1 to i32
    %c0_i32_0 = arith.constant 0 : i32
    %2 = arith.cmpi ne, %1, %c0_i32_0 : i32
    scf.if %2 {
      %c0_10 = arith.constant 0 : index
      %c0_11 = arith.constant 0 : index
      %12 = vector.load %arg5[%c0_10, %c0_11] : memref<1x64xf32, #tpu.memory_space<vmem>>, vector<1x64xf32>
      %13 = vector.shape_cast %12 : vector<1x64xf32> to vector<1x64xf32>
      %14 = vector.broadcast %13 : vector<1x64xf32> to vector<16x64xf32>
      %c0_12 = arith.constant 0 : index
      %c0_13 = arith.constant 0 : index
      %15 = vector.load %arg6[%c0_12, %c0_13] : memref<16x64xf32, #tpu.memory_space<vmem>>, vector<16x64xf32>
      tpu.vector_store %arg6[%c0_12, %c0_13], %14 {strides = array<i32>} : memref<16x64xf32, #tpu.memory_space<vmem>>, vector<16x64xf32>,
    } else {
    }
    %c0 = arith.constant 0 : index
    %c0_1 = arith.constant 0 : index
    %3 = vector.load %arg3[%c0, %c0_1] : memref<16x32xf32, #tpu.memory_space<vmem>>, vector<16x32xf32>
    %c0_2 = arith.constant 0 : index
    %c0_3 = arith.constant 0 : index
    %4 = vector.load %arg4[%c0_2, %c0_3] : memref<32x64xf32, #tpu.memory_space<vmem>>, vector<32x64xf32>
    %c0_4 = arith.constant 0 : index
    %c0_5 = arith.constant 0 : index
    %5 = vector.load %arg6[%c0_4, %c0_5] : memref<16x64xf32, #tpu.memory_space<vmem>>, vector<16x64xf32>
    %cst = arith.constant dense<0.000000e+00> : vector<16x64xf32>
    %6 = tpu.matmul %3, %4, %cst {dimension_numbers = #tpu.dot_dimension_numbers<[1], [0], [0], [1], [0, 0, 1, 1], [], []>} : vector<16x32xf32>, vector<32x64xf32>, vector<16x64xf32> -> vector<16x64xf32>
    %7 = arith.addf %5, %6 : vector<16x64xf32>
    %c0_6 = arith.constant 0 : index
    %c0_7 = arith.constant 0 : index
    %8 = vector.load %arg6[%c0_6, %c0_7] : memref<16x64xf32, #tpu.memory_space<vmem>>, vector<16x64xf32>
    tpu.vector_store %arg6[%c0_6, %c0_7], %7 {strides = array<i32>} : memref<16x64xf32, #tpu.memory_space<vmem>>, vector<16x64xf32>,
    %c0_i32_8 = arith.constant 0 : i32
    %9 = arith.cmpi eq, %arg2, %c0_i32_8 : i32
    %10 = arith.extui %9 : i1 to i32
    %c0_i32_9 = arith.constant 0 : i32
    %11 = arith.cmpi ne, %10, %c0_i32_9 : i32
    scf.if %11 {
      %c0_10 = arith.constant 0 : index
      %c0_11 = arith.constant 0 : index
      %12 = vector.load %arg6[%c0_10, %c0_11] : memref<16x64xf32, #tpu.memory_space<vmem>>, vector<16x64xf32>
      %cst_12 = arith.constant 0.000000e+00 : f32
      %13 = vector.broadcast %cst_12 : f32 to vector<16x64xf32>
      %14 = arith.maximumf %12, %13 : vector<16x64xf32>
      %c0_13 = arith.constant 0 : index
      %c0_14 = arith.constant 0 : index
      %15 = vector.load %arg6[%c0_13, %c0_14] : memref<16x64xf32, #tpu.memory_space<vmem>>, vector<16x64xf32>
      tpu.vector_store %arg6[%c0_13, %c0_14], %14 {strides = array<i32>} : memref<16x64xf32, #tpu.memory_space<vmem>>, vector<16x64xf32>,
    } else {
    }
    return
  }
  func.func @transform_0(%arg0: i32, %arg1: i32, %arg2: i32) -> (i32, i32) {
    %c0_i32 = arith.constant 0 : i32
    return %arg0, %arg2 : i32, i32
  }
  func.func @transform_1(%arg0: i32, %arg1: i32, %arg2: i32) -> (i32, i32) {
    %c0_i32 = arith.constant 0 : i32
    return %arg2, %arg1 : i32, i32
  }
  func.func @transform_2(%arg0: i32, %arg1: i32, %arg2: i32) -> (i32, i32) {
    %c0_i32 = arith.constant 0 : i32
    %c0_i32_0 = arith.constant 0 : i32
    return %c0_i32, %arg1 : i32, i32
  }
  func.func @transform_3(%arg0: i32, %arg1: i32, %arg2: i32) -> (i32, i32) {
    %c0_i32 = arith.constant 0 : i32
    return %arg0, %arg1 : i32, i32
  }
}

</mosaic_0001>

<llo_original>
// kernel: fully_connected_block.1
$region0: #{fully_connected_block.1}
  #allocation0 [shape = 'u32[]', space=smem, size = 0x4, offset = 0x4, fixed_abs, tag = 'smem constant byte address 0x4 - core index']
  #allocation1 [shape = 'u32[72,128]{1,0:T(1,128)}', space=vmem, size = 0x9000, scoped, tag = 'internal scratch']
  %s0 = inlined_call_operand.hbm [shape: f32[16,32], index: 0, kind: input, shape index: {}]
  %s1 = inlined_call_operand.hbm [shape: f32[32,64], index: 1, kind: input, shape index: {}]
  %s2 = inlined_call_operand.vmem [shape: f32[1,64], index: 2, kind: input, shape index: {}]
  %s3 = inlined_call_operand.hbm [shape: f32[16,64], index: 3, kind: output, shape index: {}]
  %s4 = sld [smem:[#allocation0]]
  $region38: #{fully_connected_block.1} parent=0
    _
  %s6 = ssub.s32 1, %s4
  %s7 = scalar_select 0, %s6, %s4
  $region1: #{fully_connected_block.1} parent=0
    #allocation2 [shape = 'u8[8192]{0}', space=vmem, size = 0x2000, scoped, tag = 'input window, operand 0, single buffered']
    #allocation3 [shape = 's32[1]{0}', space=sflag, size = 0x4, scoped, tag = 'scoped memory for fully_connected_block.1']
    #allocation4 [shape = 's32[1]{0}', space=sflag, size = 0x4, scoped, tag = 'scoped memory for fully_connected_block.1']
    #allocation5 [shape = 'u8[16384]{0}', space=vmem, size = 0x4000, scoped, tag = 'input window, operand 1, single buffered']
    #allocation6 [shape = 's32[1]{0}', space=sflag, size = 0x4, scoped, tag = 'scoped memory for fully_connected_block.1']
    #allocation7 [shape = 'u8[8192]{0}', space=vmem, size = 0x2000, scoped, tag = 'output window, operand 0, single buffered']
    %8 = vsyncpa [#allocation3], 0
    %9 = vsyncpa [#allocation6], 0
    %10 = vsyncpa [#allocation4], 0
    // Predicated region
    $region2: #{fully_connected_block.1} parent=1 // pred_check
      _
    $region3: #{fully_connected_block.1} parent=1 // pred_check_branch
      %12 = sbr.rel (0) target = $region5
    $region4: #{fully_connected_block.1} parent=1 // pred_region
      %14 = vsyncadd [#allocation3], 0
      %s15 = sshll.u32 %s0, 4
      %s16 = int_to_ptr.hbm [resolvable:$true] %s15
      %s17 = sshll.u32 [#allocation2], 4
      %s18 = int_to_ptr.vmem [resolvable:$true] %s17
      %23 = dma.hbm_to_vmem [thread:$0]  %s16, 256, %s18, [#allocation3], 128, 128, 8
    $region5: #{fully_connected_block.1} parent=1 // pred_fallthru
      _
    // Predicated region
    $region6: #{fully_connected_block.1} parent=1 // pred_check
      _
    $region7: #{fully_connected_block.1} parent=1 // pred_check_branch
      %25 = sbr.rel (0) target = $region9
    $region8: #{fully_connected_block.1} parent=1 // pred_region
      %27 = vsyncadd [#allocation6], 0
      %s28 = sshll.u32 %s1, 4
      %s29 = int_to_ptr.hbm [resolvable:$true] %s28
      %s30 = sshll.u32 [#allocation5], 4
      %s31 = int_to_ptr.vmem [resolvable:$true] %s30
      %36 = dma.hbm_to_vmem [thread:$0]  %s29, 512, %s31, [#allocation6], 128, 128, 8
    $region9: #{fully_connected_block.1} parent=1 // pred_fallthru
      _
    // Predicated region
    $region10: #{fully_connected_block.1} parent=1 // pred_check
      _
    $region11: #{fully_connected_block.1} parent=1 // pred_check_branch
      %38 = sbr.rel (0) target = $region13
    $region12: #{fully_connected_block.1} parent=1 // pred_region
      _
    $region13: #{fully_connected_block.1} parent=1 // pred_fallthru
      _
    // Predicated region
    $region14: #{fully_connected_block.1} parent=1 // pred_check
      _
    $region15: #{fully_connected_block.1} parent=1 // pred_check_branch
      %40 = sbr.rel (0) target = $region17
    $region16: #{fully_connected_block.1} parent=1 // pred_region
      %42 = dma.done [#allocation3], 256
    $region17: #{fully_connected_block.1} parent=1 // pred_fallthru
      _
    // Predicated region
    $region18: #{fully_connected_block.1} parent=1 // pred_check
      _
    $region19: #{fully_connected_block.1} parent=1 // pred_check_branch
      %44 = sbr.rel (0) target = $region21
    $region20: #{fully_connected_block.1} parent=1 // pred_region
      %46 = dma.done [#allocation6], 512
    $region21: #{fully_connected_block.1} parent=1 // pred_fallthru
      _
    %p47 = scmp.eq.s32.totalorder 0, 0
    // Predicated region
    $region22: #{fully_connected_block.1} parent=1 // pred_check
      %p48 = pneg %p47
    $region23: #{fully_connected_block.1} parent=1 // pred_check_branch
      %50 = sbr.rel (%p48) target = $region25
    $region24: #{fully_connected_block.1} parent=1 // pred_region
      %v51 = vld [vmem:[%s2] sm:$0x1]
      %v53 = vperm.slane %v51, 0
      %vm55 = vcmask 523264
      %56 = vst.msk [vmem:[#allocation7] sm:$0xff] %vm55, %v53
      %57 = vst.msk [vmem:[#allocation7 + $0x8] sm:$0xff] %vm55, %v53
    $region25: #{fully_connected_block.1} parent=1 // pred_fallthru
      _
    %v58 = vld [vmem:[#allocation2] sm:$0xff]
    %v59 = vld [vmem:[#allocation2 + $0x8] sm:$0xff]
    %v60 = vld [vmem:[#allocation5] sm:$0xff]
    %v61 = vld [vmem:[#allocation5 + $0x8] sm:$0xff]
    %v62 = vld [vmem:[#allocation5 + $0x10] sm:$0xff]
    %v63 = vld [vmem:[#allocation5 + $0x18] sm:$0xff]
    %v64 = vld [vmem:[#allocation7] sm:$0xff]
    %v65 = vld [vmem:[#allocation7 + $0x8] sm:$0xff]
    %vm66 = vcmask 261120
    %v68 = vsel %vm66, %v58, 0
    %v71 = vsel %vm66, %v59, 0
    %73 = vmatpush.msra.mxu0 0.0
    %74 = vmatpush.msra.mxu0 0.0
    %75 = vmatpush.msra.mxu0 0.0
    %76 = vmatpush.msra.mxu0 0.0
    %77 = vmatpush.msra.mxu0 0.0
    %78 = vmatpush.msra.mxu0 0.0
    %79 = vmatpush.msra.mxu0 0.0
    %80 = vmatpush.msra.mxu0 0.0
    %81 = vmatpush.msra.mxu0 0.0
    %82 = vmatpush.msra.mxu0 0.0
    %83 = vmatpush.msra.mxu0 0.0
    %84 = vmatpush.msra.mxu0 0.0
    %85 = vmatpush.msra.mxu0 %v63
    %86 = vmatpush.msra.mxu0 %v62
    %87 = vmatpush.msra.mxu0 %v61
    %88 = vmatpush.msra.mxu0 %v60
    %89 = vmatmul.f32.gmra.mxu0 %v68
    %v90 = vpop.f32.mrf.mxu0
    %v91 = vadd.f32 0.0, %v90
    %92 = vmatmul.f32.gmra.mxu0 %v71
    %v93 = vpop.f32.mrf.mxu0
    %v94 = vadd.f32 0.0, %v93
    %95 = vdwg.mxu0
    %v96 = vadd.f32 %v64, %v91
    %v97 = vadd.f32 %v65, %v94
    %vm98 = vcmask 523264
    %99 = vst.msk [vmem:[#allocation7] sm:$0xff] %vm98, %v96
    %100 = vst.msk [vmem:[#allocation7 + $0x8] sm:$0xff] %vm98, %v97
    // Predicated region
    $region26: #{fully_connected_block.1} parent=1 // pred_check
      %p101 = pneg %p47
    $region27: #{fully_connected_block.1} parent=1 // pred_check_branch
      %103 = sbr.rel (%p101) target = $region29
    $region28: #{fully_connected_block.1} parent=1 // pred_region
      %v104 = vld [vmem:[#allocation7] sm:$0xff]
      %v105 = vld [vmem:[#allocation7 + $0x8] sm:$0xff]
      %v106 = vmax.f32 %v104, 0.0
      %v107 = vmax.f32 %v105, 0.0
      %108 = vst.msk [vmem:[#allocation7] sm:$0xff] %vm98, %v106
      %109 = vst.msk [vmem:[#allocation7 + $0x8] sm:$0xff] %vm98, %v107
    $region29: #{fully_connected_block.1} parent=1 // pred_fallthru
      _
    // Predicated region
    $region30: #{fully_connected_block.1} parent=1 // pred_check
      _
    $region31: #{fully_connected_block.1} parent=1 // pred_check_branch
      %111 = sbr.rel (0) target = $region33
    $region32: #{fully_connected_block.1} parent=1 // pred_region
      %113 = vsyncadd [#allocation4], 0
      %s114 = sshll.u32 [#allocation7], 4
      %s115 = int_to_ptr.vmem [resolvable:$true] %s114
      %s116 = sshll.u32 %s3, 4
      %s117 = int_to_ptr.hbm [resolvable:$true] %s116
      %122 = dma.vmem_to_hbm [thread:$0]  %s115, 256, %s117, [#allocation4], 128, 128, 8
    $region33: #{fully_connected_block.1} parent=1 // pred_fallthru
      _
    // Predicated region
    $region34: #{fully_connected_block.1} parent=1 // pred_check
      _
    $region35: #{fully_connected_block.1} parent=1 // pred_check_branch
      %124 = sbr.rel (0) target = $region37
    $region36: #{fully_connected_block.1} parent=1 // pred_region
      %126 = dma.done [#allocation4], 256
    $region37: #{fully_connected_block.1} parent=1 // pred_fallthru
      _
    %127 = vsyncpa [#allocation3], 1
    %128 = vsyncpa [#allocation6], 1
    %129 = vsyncpa [#allocation4], 1

</llo_original>
